<compile_context>
chip_gen: v6e
topology: v6e:2x2x1
jax: 0.10.0
libtpu: 0.0.40
codegen_flags: <defaults>
</compile_context>

<pallas_src>
import functools
import math

import jax
import jax.numpy as jnp
from jax import lax
from jax.experimental import pallas as pl
from jax.experimental.pallas import tpu as pltpu

# ----------------------------- config ---------------------------------------
HIDDEN = 768          # fixed by fc1 input (768 -> 256)
N_HEADS = 12
HEAD_DIM = HIDDEN // N_HEADS
INTERMEDIATE = 3072
N_LAYERS = 2          # TODO(synk): bert-base-uncased has 12 layers; reduced for a small synthetic run
VOCAB = 128
MAX_POS = 32
TYPE_VOCAB = 2
LN_EPS = 1e-12

# Working set is a few MiB; 32 MiB keeps headroom on v7x (64 MiB/TC).
VMEM_LIMIT = 32 << 20


def _params(dim_semantics):
    return pltpu.CompilerParams(dimension_semantics=dim_semantics,
                                vmem_limit_bytes=VMEM_LIMIT)


def _pick_tile(dim, pref, step):
    """Largest multiple of `step` <= pref that divides dim (or dim itself)."""
    if dim <= pref:
        return dim
    t = (pref // step) * step
    while t >= step:
        if dim % t == 0:
            return t
        t -= step
    return dim


def _row_tile(M):
    """Prefer >=2 parallel row blocks (keeps both v7x TensorCores busy)."""
    return _pick_tile(M, max(8, min(256, M // 2)), 8)


_GELU_C = 0.7978845608028654  # sqrt(2/pi)


def _apply_act(y, act):
    if act == "relu":
        return jnp.maximum(y, 0.0)
    if act == "gelu":
        # TODO(synk): tanh-approx GELU (EUP tanh); HF BERT uses exact erf (~1e-3 deviation).
        return 0.5 * y * (1.0 + jnp.tanh(_GELU_C * (y + 0.044715 * y * y * y)))
    return y


# --------------------------- dense (matmul) kernels ---------------------------
def _dense_kernel_k1(x_ref, w_ref, b_ref, o_ref, *, act):
    # Single-K-tile specialization: no accumulator scratch, no pl.when.
    y = jnp.dot(x_ref[...].astype(jnp.bfloat16), w_ref[...],
                preferred_element_type=jnp.float32) + b_ref[...]
    o_ref[...] = _apply_act(y, act).astype(o_ref.dtype)


def _dense_kernel_acc(x_ref, w_ref, b_ref, o_ref, acc_ref, *, act):
    @pl.when(pl.program_id(2) == 0)
    def _():
        acc_ref[...] = jnp.zeros_like(acc_ref)

    acc_ref[...] += jnp.dot(x_ref[...].astype(jnp.bfloat16), w_ref[...],
                            preferred_element_type=jnp.float32)

    @pl.when(pl.program_id(2) == pl.num_programs(2) - 1)
    def _():
        y = acc_ref[...] + b_ref[...]
        o_ref[...] = _apply_act(y, act).astype(o_ref.dtype)


def dense(x, w, b, act="none", out_dtype=jnp.bfloat16,
          tn_pref=4096, tk_pref=4096):
    """y = act(x @ w + b). x:(M,K) bf16/f32, w:(K,N) bf16, b:(N,) f32."""
    M, K = x.shape
    Kw, N = w.shape
    assert K == Kw
    tm = _row_tile(M)
    tn = _pick_tile(N, tn_pref, 128)
    tk = _pick_tile(K, tk_pref, 128)
    b2 = b.reshape(1, N)

    if tk == K:  # the common case here: one K tile, no scratch accumulator
        return pl.pallas_call(
            functools.partial(_dense_kernel_k1, act=act),
            out_shape=jax.ShapeDtypeStruct((M, N), out_dtype),
            grid=(M // tm, N // tn),
            in_specs=[
                pl.BlockSpec((tm, K), lambda i, j: (i, 0)),
                pl.BlockSpec((K, tn), lambda i, j: (0, j)),
                pl.BlockSpec((1, tn), lambda i, j: (0, j)),
            ],
            out_specs=pl.BlockSpec((tm, tn), lambda i, j: (i, j)),
            compiler_params=_params(("parallel", "parallel")),
        )(x, w, b2)

    return pl.pallas_call(
        functools.partial(_dense_kernel_acc, act=act),
        out_shape=jax.ShapeDtypeStruct((M, N), out_dtype),
        grid=(M // tm, N // tn, K // tk),
        in_specs=[
            pl.BlockSpec((tm, tk), lambda i, j, k: (i, k)),
            pl.BlockSpec((tk, tn), lambda i, j, k: (k, j)),
            pl.BlockSpec((1, tn), lambda i, j, k: (0, j)),
        ],
        out_specs=pl.BlockSpec((tm, tn), lambda i, j, k: (i, j)),
        scratch_shapes=[pltpu.VMEM((tm, tn), jnp.float32)],
        compiler_params=_params(("parallel", "parallel", "arbitrary")),
    )(x, w, b2)


# ----------------- fused dense + residual + LayerNorm kernels -----------------
def _layernorm_tail(y, g, beta, eps, out_dtype):
    mean = jnp.mean(y, axis=-1, keepdims=True)
    var = jnp.mean((y - mean) ** 2, axis=-1, keepdims=True)
    inv = lax.rsqrt(var + eps)
    return ((y - mean) * inv * g + beta).astype(out_dtype)


def _dense_res_ln_kernel_k1(x_ref, w_ref, b_ref, r_ref, g_ref, beta_ref,
                            o_ref, *, eps):
    y = (jnp.dot(x_ref[...].astype(jnp.bfloat16), w_ref[...],
                 preferred_element_type=jnp.float32)
         + b_ref[...] + r_ref[...].astype(jnp.float32))
    o_ref[...] = _layernorm_tail(y, g_ref[...], beta_ref[...], eps, o_ref.dtype)


def _dense_res_ln_kernel_acc(x_ref, w_ref, b_ref, r_ref, g_ref, beta_ref,
                             o_ref, acc_ref, *, eps):
    k = pl.program_id(1)

    @pl.when(k == 0)
    def _():
        acc_ref[...] = jnp.zeros_like(acc_ref)

    acc_ref[...] += jnp.dot(x_ref[...].astype(jnp.bfloat16), w_ref[...],
                            preferred_element_type=jnp.float32)

    @pl.when(k == pl.num_programs(1) - 1)
    def _():
        y = acc_ref[...] + b_ref[...] + r_ref[...].astype(jnp.float32)
        o_ref[...] = _layernorm_tail(y, g_ref[...], beta_ref[...], eps, o_ref.dtype)


def dense_residual_layernorm(x, w, b, residual, gamma, beta,
                             eps=LN_EPS, tk_pref=4096):
    """LayerNorm(x @ w + b + residual); N (=HIDDEN) kept whole for the LN. bf16 out."""
    M, K = x.shape
    Kw, N = w.shape
    assert K == Kw and residual.shape == (M, N)
    tm = _row_tile(M)
    tk = _pick_tile(K, tk_pref, 128)
    args = (x, w, b.reshape(1, N), residual, gamma.reshape(1, N), beta.reshape(1, N))

    if tk == K:  # single K tile: no accumulator scratch
        return pl.pallas_call(
            functools.partial(_dense_res_ln_kernel_k1, eps=eps),
            out_shape=jax.ShapeDtypeStruct((M, N), jnp.bfloat16),
            grid=(M // tm,),
            in_specs=[
                pl.BlockSpec((tm, K), lambda i: (i, 0)),
                pl.BlockSpec((K, N), lambda i: (0, 0)),
                pl.BlockSpec((1, N), lambda i: (0, 0)),
                pl.BlockSpec((tm, N), lambda i: (i, 0)),
                pl.BlockSpec((1, N), lambda i: (0, 0)),
                pl.BlockSpec((1, N), lambda i: (0, 0)),
            ],
            out_specs=pl.BlockSpec((tm, N), lambda i: (i, 0)),
            compiler_params=_params(("parallel",)),
        )(*args)

    return pl.pallas_call(
        functools.partial(_dense_res_ln_kernel_acc, eps=eps),
        out_shape=jax.ShapeDtypeStruct((M, N), jnp.bfloat16),
        grid=(M // tm, K // tk),
        in_specs=[
            pl.BlockSpec((tm, tk), lambda i, k: (i, k)),
            pl.BlockSpec((tk, N), lambda i, k: (k, 0)),
            pl.BlockSpec((1, N), lambda i, k: (0, 0)),
            pl.BlockSpec((tm, N), lambda i, k: (i, 0)),
            pl.BlockSpec((1, N), lambda i, k: (0, 0)),
            pl.BlockSpec((1, N), lambda i, k: (0, 0)),
        ],
        out_specs=pl.BlockSpec((tm, N), lambda i, k: (i, 0)),
        scratch_shapes=[pltpu.VMEM((tm, N), jnp.float32)],
        compiler_params=_params(("parallel", "arbitrary")),
    )(*args)


# ------------------------------ LayerNorm -------------------------------------
def _ln_kernel(x_ref, g_ref, b_ref, o_ref, *, eps):
    x = x_ref[...].astype(jnp.float32)
    o_ref[...] = _layernorm_tail(x, g_ref[...], b_ref[...], eps, o_ref.dtype)


def layernorm(x, gamma, beta, eps=LN_EPS):
    """No-residual LayerNorm over the last dim (embeddings). bf16 out."""
    M, H = x.shape
    tm = _row_tile(M)
    return pl.pallas_call(
        functools.partial(_ln_kernel, eps=eps),
        out_shape=jax.ShapeDtypeStruct((M, H), jnp.bfloat16),
        grid=(M // tm,),
        in_specs=[
            pl.BlockSpec((tm, H), lambda i: (i, 0)),
            pl.BlockSpec((1, H), lambda i: (0, 0)),
            pl.BlockSpec((1, H), lambda i: (0, 0)),
        ],
        out_specs=pl.BlockSpec((tm, H), lambda i: (i, 0)),
        compiler_params=_params(("parallel",)),
    )(x, gamma.reshape(1, H), beta.reshape(1, H))


# ------------------------------ attention -------------------------------------
def _attn_kernel(qkv_ref, m_ref, o_ref, *, n_heads, head_dim):
    """One batch element per grid step.  qkv block: (1, S, 3*hid) bf16 with the
    softmax scale already folded into the Q weights.  Output: lane-dense
    (1, S, hid) bf16 in (B, S, HIDDEN) order (no transposes needed outside)."""
    hid = n_heads * head_dim
    qkv = qkv_ref[0]                                # (S, 3*hid) bf16
    mask = m_ref[0]                                 # (1, S) additive f32
    ctx_heads = []
    for h in range(n_heads):                        # static unroll (12 tiny matmuls)
        q = qkv[:, h * head_dim:(h + 1) * head_dim]                    # (S, D)
        k = qkv[:, hid + h * head_dim: hid + (h + 1) * head_dim]       # (S, D)
        v = qkv[:, 2 * hid + h * head_dim: 2 * hid + (h + 1) * head_dim]
        s = lax.dot_general(q, k, (((1,), (1,)), ((), ())),
                            preferred_element_type=jnp.float32)        # (S, S)
        s = s + mask
        s = s - jnp.max(s, axis=-1, keepdims=True)
        p = jnp.exp(s)
        p = p / jnp.sum(p, axis=-1, keepdims=True)  # single kv tile: plain softmax
        ctx_heads.append(jnp.dot(p.astype(jnp.bfloat16), v,
                                 preferred_element_type=jnp.float32))  # (S, D)
    o_ref[0] = jnp.concatenate(ctx_heads, axis=-1).astype(o_ref.dtype)


def attention(qkv, add_mask):
    """qkv: (B, S, 3*HIDDEN) bf16; add_mask: (B, 1, S) additive f32.
    Returns (B, S, HIDDEN) bf16."""
    B, S, threeH = qkv.shape
    kernel = functools.partial(_attn_kernel, n_heads=N_HEADS, head_dim=HEAD_DIM)
    return pl.pallas_call(
        kernel,
        out_shape=jax.ShapeDtypeStruct((B, S, HIDDEN), jnp.bfloat16),
        grid=(B,),
        in_specs=[
            pl.BlockSpec((1, S, threeH), lambda b: (b, 0, 0)),
            pl.BlockSpec((1, 1, S), lambda b: (b, 0, 0)),
        ],
        out_specs=pl.BlockSpec((1, S, HIDDEN), lambda b: (b, 0, 0)),
        compiler_params=_params(("parallel",)),
    )(qkv, add_mask)


# ---------------------------- classifier head ----------------------------------
def _head_kernel(x_ref, w1_ref, b1_ref, w2_ref, b2_ref, o_ref):
    x = x_ref[...].astype(jnp.bfloat16)
    h = jnp.dot(x, w1_ref[...], preferred_element_type=jnp.float32) + b1_ref[...]
    h = jnp.maximum(h, 0.0)                       # ReLU
    # TODO(synk): nn.Dropout(0.2) is identity in eval mode; not sampled here.
    y = jnp.dot(h.astype(jnp.bfloat16), w2_ref[...],
                preferred_element_type=jnp.float32) + b2_ref[...]
    o_ref[...] = y.astype(o_ref.dtype)


def classifier_head(cls, w1, b1, w2, b2):
    """Fused fc1 -> ReLU -> (dropout=id) -> fc2; tiny operands, single block."""
    B, K = cls.shape
    N1 = w1.shape[1]
    N2 = w2.shape[1]
    return pl.pallas_call(
        _head_kernel,
        out_shape=jax.ShapeDtypeStruct((B, N2), jnp.float32),
        grid=(1,),
        in_specs=[
            pl.BlockSpec((B, K), lambda i: (0, 0)),
            pl.BlockSpec((K, N1), lambda i: (0, 0)),
            pl.BlockSpec((1, N1), lambda i: (0, 0)),
            pl.BlockSpec((N1, N2), lambda i: (0, 0)),
            pl.BlockSpec((1, N2), lambda i: (0, 0)),
        ],
        out_specs=pl.BlockSpec((B, N2), lambda i: (0, 0)),
        compiler_params=_params(("arbitrary",)),
    )(cls, w1, b1.reshape(1, N1), w2, b2.reshape(1, N2))


# --------------------------- parameter init ------------------------------------
def _normal_f32(key, shape, std=0.02):
    return std * jax.random.normal(key, shape, dtype=jnp.float32)


def init_params(key):
    keys = iter(jax.random.split(key, 3 + N_LAYERS * 4 + 2))
    p = {
        "word_emb": _normal_f32(next(keys), (VOCAB, HIDDEN)),
        "pos_emb": _normal_f32(next(keys), (MAX_POS, HIDDEN)),
        "type_emb": _normal_f32(next(keys), (TYPE_VOCAB, HIDDEN)),
        "emb_ln_g": jnp.ones((HIDDEN,), jnp.float32),
        "emb_ln_b": jnp.zeros((HIDDEN,), jnp.float32),
        "layers": [],
    }
    q_scale = 1.0 / math.sqrt(HEAD_DIM)
    for _ in range(N_LAYERS):
        # fused [q | k | v] projection; softmax 1/sqrt(D) folded into the Q slice
        qkv_w = _normal_f32(next(keys), (HIDDEN, 3 * HIDDEN))
        qkv_w = qkv_w.at[:, :HIDDEN].multiply(q_scale)
        lp = {
            "qkv_w": qkv_w.astype(jnp.bfloat16),
            "qkv_b": jnp.zeros((3 * HIDDEN,), jnp.float32),  # (Q-slice scale folded; zero bias unaffected)
            "ao_w": _normal_f32(next(keys), (HIDDEN, HIDDEN)).astype(jnp.bfloat16),
            "ao_b": jnp.zeros((HIDDEN,), jnp.float32),
            "attn_ln_g": jnp.ones((HIDDEN,), jnp.float32),
            "attn_ln_b": jnp.zeros((HIDDEN,), jnp.float32),
            "i_w": _normal_f32(next(keys), (HIDDEN, INTERMEDIATE)).astype(jnp.bfloat16),
            "i_b": jnp.zeros((INTERMEDIATE,), jnp.float32),
            "o_w": _normal_f32(next(keys), (INTERMEDIATE, HIDDEN)).astype(jnp.bfloat16),
            "o_b": jnp.zeros((HIDDEN,), jnp.float32),
            "out_ln_g": jnp.ones((HIDDEN,), jnp.float32),
            "out_ln_b": jnp.zeros((HIDDEN,), jnp.float32),
        }
        p["layers"].append(lp)
    p["fc1_w"] = _normal_f32(next(keys), (HIDDEN, 256)).astype(jnp.bfloat16)
    p["fc1_b"] = jnp.zeros((256,), jnp.float32)
    p["fc2_w"] = _normal_f32(next(keys), (256, 2)).astype(jnp.bfloat16)
    p["fc2_b"] = jnp.zeros((2,), jnp.float32)
    return p


# ------------------------------ forward ----------------------------------------
def model_forward(params, input_ids, attention_mask=None, token_type_ids=None):
    B, S = input_ids.shape
    if attention_mask is None:
        attention_mask = jnp.ones((B, S), jnp.int32)
    if token_type_ids is None:
        token_type_ids = jnp.zeros((B, S), jnp.int32)
    M = B * S

    # embeddings (gathers are XLA glue; LayerNorm runs in a Pallas kernel)
    emb = (jnp.take(params["word_emb"], input_ids, axis=0)
           + params["pos_emb"][None, :S, :]
           + jnp.take(params["type_emb"], token_type_ids, axis=0))
    x = layernorm(emb.reshape(M, HIDDEN), params["emb_ln_g"], params["emb_ln_b"])
    # BERT embedding dropout: identity in eval mode

    # additive mask, (B, 1, S) — no per-head replication
    add_mask = ((1.0 - attention_mask.astype(jnp.float32)) * -1e9)[:, None, :]

    for lp in params["layers"]:
        h = x                                                     # (M, HIDDEN) bf16
        # fused Q/K/V projection: one matmul, N = 2304, grid (2, 1)
        qkv = dense(h, lp["qkv_w"], lp["qkv_b"])                  # (M, 2304) bf16
        # one lane-dense attention step per batch element
        ctx = attention(qkv.reshape(B, S, 3 * HIDDEN), add_mask)  # (B, S, HIDDEN) bf16
        # attention out-proj + residual + LayerNorm fused
        x1 = dense_residual_layernorm(ctx.reshape(M, HIDDEN), lp["ao_w"], lp["ao_b"],
                                      h, lp["attn_ln_g"], lp["attn_ln_b"])
        # FFN: intermediate GELU, then out-proj + residual + LayerNorm fused
        inter = dense(x1, lp["i_w"], lp["i_b"], act="gelu")       # (M, 3072) bf16
        x = dense_residual_layernorm(inter, lp["o_w"], lp["o_b"], x1,
                                     lp["out_ln_g"], lp["out_ln_b"])

    last_hidden = x.reshape(B, S, HIDDEN)
    cls = last_hidden[:, 0]                                       # last_hidden_state[:, 0]
    logits = classifier_head(cls, params["fc1_w"], params["fc1_b"],
                             params["fc2_w"], params["fc2_b"])
    return logits


# ------------------------------- main -------------------------------------------
if __name__ == "__main__":
    key = jax.random.PRNGKey(0)
    pkey, dkey = jax.random.split(key)
    params = init_params(pkey)

    B, S = 2, 8
    input_ids = jax.random.randint(dkey, (B, S), 0, VOCAB, dtype=jnp.int32)
    attention_mask = jnp.ones((B, S), jnp.int32)
    token_type_ids = jnp.zeros((B, S), jnp.int32)

    logits = model_forward(params, input_ids, attention_mask, token_type_ids)
    logits = jax.block_until_ready(logits)
    assert logits.shape == (B, 2) and logits.dtype == jnp.float32
    print("KERNEL_OK")
</pallas_src>

<mosaic_0001>
module attributes {stable_mosaic.version = 11 : i64} {
  func.func @_ln_kernel(%arg0: i32, %arg1: memref<8x768xf32, #tpu.memory_space<vmem>>, %arg2: memref<1x768xf32, #tpu.memory_space<vmem>>, %arg3: memref<1x768xf32, #tpu.memory_space<vmem>>, %arg4: memref<8x768xbf16, #tpu.memory_space<vmem>>) attributes {dimension_semantics = [#tpu.dimension_semantics<parallel>], iteration_bounds = array<i64: 2>, scalar_prefetch = 0 : i64, scratch_operands = 0 : i64, tpu.core_type = #tpu.core_type<tc>, window_params = [{transform_indices = @transform_0, window_bounds = array<i64: 8, 768>}, {pipeline_mode = #tpu.pipeline_mode<synchronous>, transform_indices = @transform_1, window_bounds = array<i64: 1, 768>}, {pipeline_mode = #tpu.pipeline_mode<synchronous>, transform_indices = @transform_2, window_bounds = array<i64: 1, 768>}, {transform_indices = @transform_3, window_bounds = array<i64: 8, 768>}]} {
    %c0 = arith.constant 0 : index
    %c0_0 = arith.constant 0 : index
    %0 = vector.load %arg1[%c0, %c0_0] : memref<8x768xf32, #tpu.memory_space<vmem>>, vector<8x768xf32>
    %c0_1 = arith.constant 0 : index
    %c0_2 = arith.constant 0 : index
    %1 = vector.load %arg2[%c0_1, %c0_2] : memref<1x768xf32, #tpu.memory_space<vmem>>, vector<1x768xf32>
    %c0_3 = arith.constant 0 : index
    %c0_4 = arith.constant 0 : index
    %2 = vector.load %arg3[%c0_3, %c0_4] : memref<1x768xf32, #tpu.memory_space<vmem>>, vector<1x768xf32>
    %cst = arith.constant dense<0.000000e+00> : vector<8xf32>
    %3 = vector.multi_reduction <add>, %0, %cst [1] : vector<8x768xf32> to vector<8xf32>
    %4 = vector.shape_cast %3 : vector<8xf32> to vector<8x1xf32>
    %cst_5 = arith.constant 7.680000e+02 : f32
    %5 = vector.broadcast %cst_5 : f32 to vector<8x1xf32>
    %6 = arith.divf %4, %5 : vector<8x1xf32>
    %7 = vector.broadcast %6 : vector<8x1xf32> to vector<8x768xf32>
    %8 = arith.subf %0, %7 : vector<8x768xf32>
    %9 = arith.mulf %8, %8 : vector<8x768xf32>
    %cst_6 = arith.constant dense<0.000000e+00> : vector<8xf32>
    %10 = vector.multi_reduction <add>, %9, %cst_6 [1] : vector<8x768xf32> to vector<8xf32>
    %11 = vector.shape_cast %10 : vector<8xf32> to vector<8x1xf32>
    %cst_7 = arith.constant 7.680000e+02 : f32
    %12 = vector.broadcast %cst_7 : f32 to vector<8x1xf32>
    %13 = arith.divf %11, %12 : vector<8x1xf32>
    %cst_8 = arith.constant 9.99999996E-13 : f32
    %14 = vector.broadcast %cst_8 : f32 to vector<8x1xf32>
    %15 = arith.addf %13, %14 : vector<8x1xf32>
    %16 = math.rsqrt %15 : vector<8x1xf32>
    %17 = vector.broadcast %6 : vector<8x1xf32> to vector<8x768xf32>
    %18 = arith.subf %0, %17 : vector<8x768xf32>
    %19 = vector.broadcast %16 : vector<8x1xf32> to vector<8x768xf32>
    %20 = arith.mulf %18, %19 : vector<8x768xf32>
    %21 = vector.broadcast %1 : vector<1x768xf32> to vector<8x768xf32>
    %22 = arith.mulf %20, %21 : vector<8x768xf32>
    %23 = vector.broadcast %2 : vector<1x768xf32> to vector<8x768xf32>
    %24 = arith.addf %22, %23 : vector<8x768xf32>
    %25 = arith.truncf %24 : vector<8x768xf32> to vector<8x768xbf16>
    %c0_9 = arith.constant 0 : index
    %c0_10 = arith.constant 0 : index
    %26 = vector.load %arg4[%c0_9, %c0_10] : memref<8x768xbf16, #tpu.memory_space<vmem>>, vector<8x768xbf16>
    tpu.vector_store %arg4[%c0_9, %c0_10], %25 {strides = array<i32>} : memref<8x768xbf16, #tpu.memory_space<vmem>>, vector<8x768xbf16>,
    return
  }
  func.func @transform_0(%arg0: i32) -> (i32, i32) {
    %c0_i32 = arith.constant 0 : i32
    %c0_i32_0 = arith.constant 0 : i32
    return %arg0, %c0_i32 : i32, i32
  }
  func.func @transform_1(%arg0: i32) -> (i32, i32) {
    %c0_i32 = arith.constant 0 : i32
    %c0_i32_0 = arith.constant 0 : i32
    %c0_i32_1 = arith.constant 0 : i32
    return %c0_i32, %c0_i32_0 : i32, i32
  }
  func.func @transform_2(%arg0: i32) -> (i32, i32) {
    %c0_i32 = arith.constant 0 : i32
    %c0_i32_0 = arith.constant 0 : i32
    %c0_i32_1 = arith.constant 0 : i32
    return %c0_i32, %c0_i32_0 : i32, i32
  }
  func.func @transform_3(%arg0: i32) -> (i32, i32) {
    %c0_i32 = arith.constant 0 : i32
    %c0_i32_0 = arith.constant 0 : i32
    return %arg0, %c0_i32 : i32, i32
  }
}

</mosaic_0001>

<llo_original>
// kernel: tpu_custom_call.1
$region0: #{tpu_custom_call.1}
  #allocation0 [shape = 'u32[]', space=smem, size = 0x4, offset = 0x4, fixed_abs, tag = 'smem constant byte address 0x4 - core index']
  #allocation1 [shape = 'u32[144,128]{1,0:T(1,128)}', space=vmem, size = 0x12000, scoped, tag = 'internal scratch']
  %s0 = inlined_call_operand.hbm [shape: f32[16,768], index: 0, kind: input, shape index: {}]
  %s1 = inlined_call_operand.hbm [shape: f32[1,768], index: 1, kind: input, shape index: {}]
  %s2 = inlined_call_operand.hbm [shape: f32[1,768], index: 2, kind: input, shape index: {}]
  %s3 = inlined_call_operand.hbm [shape: bf16[16,768], index: 3, kind: output, shape index: {}]
  %s4 = sld [smem:[#allocation0]]
  $region57: #{tpu_custom_call.1} parent=0
    _
  %s6 = ssub.s32 1, %s4
  %s7 = scalar_select 0, %s6, %s4
  $region1: #{tpu_custom_call.1} parent=0
    #allocation2 [shape = 'u8[49152]{0}', space=vmem, size = 0xc000, scoped, tag = 'input window, operand 0']
    #allocation3 [shape = 's32[2]{0}', space=sflag, size = 0x8, scoped, tag = 'scoped memory for tpu_custom_call.1']
    #allocation4 [shape = 's32[2]{0}', space=sflag, size = 0x8, scoped, tag = 'scoped memory for tpu_custom_call.1']
    #allocation5 [shape = 'u8[3072]{0}', space=vmem, size = 0xc00, scoped, tag = 'input window, operand 1, single buffered']
    #allocation6 [shape = 's32[1]{0}', space=sflag, size = 0x4, scoped, tag = 'scoped memory for tpu_custom_call.1']
    #allocation7 [shape = 'u8[3072]{0}', space=vmem, size = 0xc00, scoped, tag = 'input window, operand 2, single buffered']
    #allocation8 [shape = 'u8[24576]{0}', space=vmem, size = 0x6000, scoped, tag = 'output window, operand 0']
    %8 = vsyncpa [#allocation3], 0
    %s9 = scalar_lea.sflag [#allocation3], 1
    %10 = vsyncpa %s9, 0
    %11 = vsyncpa [#allocation6], 0
    %12 = vsyncpa [#allocation4], 0
    %s13 = scalar_lea.sflag [#allocation4], 1
    %14 = vsyncpa %s13, 0
    loop: start=0, step=1, limit=4
    $region2: #{tpu_custom_call.1} parent=1 // loop_pre_header
      _
    $region3: #{tpu_custom_call.1} parent=1 // loop_header
      %s16 = sphi 0, %s20
      %p17 = scmp.ge.s32.totalorder %s16, 4
      %s26 = sphi 0, %s28
      %s29 = sphi 0, %s26
      %s30 = sphi 0, %s29
      %s46 = sphi 0, %s30
      %s50 = sphi 0, %s50
      %s52 = sphi 0, %s50
      %s53 = sphi 0, %s52
      %s67 = sphi 0, %s53
      %s71 = sphi 0, %s71
      %s73 = sphi 0, %s71
      %s74 = sphi 0, %s73
      %s88 = sphi 0, %s74
      %s94 = sphi 0, %s96
      %s97 = sphi 0, %s94
      %s98 = sphi 0, %s97
      %s114 = sphi 0, %s98
    $region4: #{tpu_custom_call.1} parent=1 // loop_header_branch
      %19 = sbr.rel (%p17) target = $region8
    $region5: #{tpu_custom_call.1} parent=1 // loop_body
      %s21 = ssub.s32 %s16, 1
      %s22 = ssub.s32 %s16, 2
      %s23 = sadd.s32 %s16, 1
      %s24 = ssub.s32 %s16, %s23
      %p25 = scmp.eq.s32.totalorder %s24, 0
      %s27 = sadd.s32 %s26, 1
      %s28 = scalar_select %p25, %s26, %s27
      %p31 = pneg %p25
      %p32 = scmp.eq.s32.totalorder %s16, 1
      %p33 = por %p31, %p32
      %p34 = scmp.ne.s32.totalorder %s26, %s29
      %p35 = scmp.eq.s32.totalorder %s16, 0
      %p36 = por %p34, %p35
      %p37 = scmp.ne.s32.totalorder %s26, %s29
      %p38 = scmp.eq.s32.totalorder %s21, 1
      %p39 = por %p37, %p38
      %p40 = scmp.ne.s32.totalorder %s29, %s30
      %p41 = scmp.eq.s32.totalorder %s21, 0
      %p42 = por %p40, %p41
      %p43 = scmp.ne.s32.totalorder %s29, %s30
      %p44 = scmp.eq.s32.totalorder %s22, 1
      %p45 = por %p43, %p44
      %p47 = scmp.ne.s32.totalorder %s30, %s46
      %p48 = scmp.eq.s32.totalorder %s22, 0
      %p49 = por %p47, %p48
      %s51 = sadd.s32 %s50, 1
      %p54 = scmp.eq.s32.totalorder %s16, 1
      %p55 = scmp.ne.s32.totalorder %s50, %s52
      %p56 = scmp.eq.s32.totalorder %s16, 0
      %p57 = por %p55, %p56
      %p58 = scmp.ne.s32.totalorder %s50, %s52
      %p59 = scmp.eq.s32.totalorder %s21, 1
      %p60 = por %p58, %p59
      %p61 = scmp.ne.s32.totalorder %s52, %s53
      %p62 = scmp.eq.s32.totalorder %s21, 0
      %p63 = por %p61, %p62
      %p64 = scmp.ne.s32.totalorder %s52, %s53
      %p65 = scmp.eq.s32.totalorder %s22, 1
      %p66 = por %p64, %p65
      %p68 = scmp.ne.s32.totalorder %s53, %s67
      %p69 = scmp.eq.s32.totalorder %s22, 0
      %p70 = por %p68, %p69
      %s72 = sadd.s32 %s71, 1
      %p75 = scmp.eq.s32.totalorder %s16, 1
      %p76 = scmp.ne.s32.totalorder %s71, %s73
      %p77 = scmp.eq.s32.totalorder %s16, 0
      %p78 = por %p76, %p77
      %p79 = scmp.ne.s32.totalorder %s71, %s73
      %p80 = scmp.eq.s32.totalorder %s21, 1
      %p81 = por %p79, %p80
      %p82 = scmp.ne.s32.totalorder %s73, %s74
      %p83 = scmp.eq.s32.totalorder %s21, 0
      %p84 = por %p82, %p83
      %p85 = scmp.ne.s32.totalorder %s73, %s74
      %p86 = scmp.eq.s32.totalorder %s22, 1
      %p87 = por %p85, %p86
      %p89 = scmp.ne.s32.totalorder %s74, %s88
      %p90 = scmp.eq.s32.totalorder %s22, 0
      %p91 = por %p89, %p90
      %s92 = ssub.s32 %s16, %s23
      %p93 = scmp.eq.s32.totalorder %s92, 0
      %s95 = sadd.s32 %s94, 1
      %s96 = scalar_select %p93, %s94, %s95
      %p99 = pneg %p93
      %p100 = scmp.eq.s32.totalorder %s16, 1
      %p101 = por %p99, %p100
      %p102 = scmp.ne.s32.totalorder %s94, %s97
      %p103 = scmp.eq.s32.totalorder %s16, 0
      %p104 = por %p102, %p103
      %p105 = scmp.ne.s32.totalorder %s94, %s97
      %p106 = scmp.eq.s32.totalorder %s21, 1
      %p107 = por %p105, %p106
      %p108 = scmp.ne.s32.totalorder %s97, %s98
      %p109 = scmp.eq.s32.totalorder %s21, 0
      %p110 = por %p108, %p109
      %p111 = scmp.ne.s32.totalorder %s97, %s98
      %p112 = scmp.eq.s32.totalorder %s22, 1
      %p113 = por %p111, %p112
      %p115 = scmp.ne.s32.totalorder %s98, %s114
      %p116 = scmp.eq.s32.totalorder %s22, 0
      %p117 = por %p115, %p116
      %p118 = scmp.le.s32.totalorder 1, %s16
      %p119 = scmp.lt.s32.totalorder %s16, 3
      %p120 = pnand %p118, %p119
      %p121 = pneg %p120
      // Predicated region
      $region9: #{tpu_custom_call.1} parent=5 // pred_check
        _
      $region10: #{tpu_custom_call.1} parent=5 // pred_check_branch
        %123 = sbr.rel (%p120) target = $region12
      $region11: #{tpu_custom_call.1} parent=5 // pred_region
        %s124 = ssub.s32 %s16, 1
        // Predicated region
        $region13: #{tpu_custom_call.1} parent=11 // pred_check
          %p125 = pneg %p63
        $region14: #{tpu_custom_call.1} parent=11 // pred_check_branch
          %127 = sbr.rel (%p125) target = $region16
        $region15: #{tpu_custom_call.1} parent=11 // pred_region
          %s129 = ssub.s32 96, 96
          %130 = vsyncadd [#allocation6], %s129
          %s132 = sshll.u32 [#allocation5], 4
          %s133 = int_to_ptr.vmem [resolvable:$true] %s132
          %135 = dma.hbm_to_vmem [thread:$0]  %s1, 96, %s133, [#allocation6]
        $region16: #{tpu_custom_call.1} parent=11 // pred_fallthru
          _
        // Predicated region
        $region17: #{tpu_custom_call.1} parent=11 // pred_check
          %p136 = pneg %p84
        $region18: #{tpu_custom_call.1} parent=11 // pred_check_branch
          %138 = sbr.rel (%p136) target = $region20
        $region19: #{tpu_custom_call.1} parent=11 // pred_region
          %s140 = ssub.s32 96, 96
          %141 = vsyncadd [#allocation6], %s140
          %s143 = sshll.u32 [#allocation7], 4
          %s144 = int_to_ptr.vmem [resolvable:$true] %s143
          %146 = dma.hbm_to_vmem [thread:$0]  %s2, 96, %s144, [#allocation6]
        $region20: #{tpu_custom_call.1} parent=11 // pred_fallthru
          _
      $region12: #{tpu_custom_call.1} parent=5 // pred_fallthru
        _
      %p147 = scmp.lt.s32.totalorder %s16, 2
      // Predicated region
      $region21: #{tpu_custom_call.1} parent=5 // pred_check
        %p148 = pneg %p147
      $region22: #{tpu_custom_call.1} parent=5 // pred_check_branch
        %150 = sbr.rel (%p148) target = $region24
      $region23: #{tpu_custom_call.1} parent=5 // pred_region
        // Predicated region
        $region25: #{tpu_custom_call.1} parent=23 // pred_check
          %p151 = pneg %p36
        $region26: #{tpu_custom_call.1} parent=23 // pred_check_branch
          %153 = sbr.rel (%p151) target = $region28
        $region27: #{tpu_custom_call.1} parent=23 // pred_region
          %s154 = sand.u32 %s26, 1
          %s155 = scalar_lea.sflag [#allocation3], %s154
          %s156 = sand.u32 %s26, 1
          %s157 = smul.addr %s156, 48
          %s158 = scalar_lea.vmem [#allocation2], %s157
          %s160 = ssub.s32 768, 768
          %161 = vsyncadd %s155, %s160
          %s162 = smul.addr %s16, 6
          %s163 = smul.addr %s162, 128
          %s164 = scalar_lea.hbm %s0, %s163
          %s166 = sshll.u32 %s158, 4
          %s167 = int_to_ptr.vmem [resolvable:$true] %s166
          %169 = dma.hbm_to_vmem [thread:$0]  %s164, 768, %s167, %s155
        $region28: #{tpu_custom_call.1} parent=23 // pred_fallthru
          _
      $region24: #{tpu_custom_call.1} parent=5 // pred_fallthru
        _
      %p170 = scmp.le.s32.totalorder 1, %s16
      %p171 = scmp.lt.s32.totalorder %s16, 3
      %p172 = pnand %p170, %p171
      %p173 = pneg %p172
      // Predicated region
      $region29: #{tpu_custom_call.1} parent=5 // pred_check
        _
      $region30: #{tpu_custom_call.1} parent=5 // pred_check_branch
        %175 = sbr.rel (%p172) target = $region32
      $region31: #{tpu_custom_call.1} parent=5 // pred_region
        %s176 = ssub.s32 %s16, 1
        %s177 = sand.u32 %s29, 1
        %s178 = scalar_lea.sflag [#allocation3], %s177
        %s179 = sand.u32 %s29, 1
        %s180 = smul.addr %s179, 48
        %s181 = scalar_lea.vmem [#allocation2], %s180
        // Predicated region
        $region33: #{tpu_custom_call.1} parent=31 // pred_check
          %p182 = pneg %p42
        $region34: #{tpu_custom_call.1} parent=31 // pred_check_branch
          %184 = sbr.rel (%p182) target = $region36
        $region35: #{tpu_custom_call.1} parent=31 // pred_region
          %185 = dma.done %s178, 768
        $region36: #{tpu_custom_call.1} parent=31 // pred_fallthru
          _
        // Predicated region
        $region37: #{tpu_custom_call.1} parent=31 // pred_check
          %p186 = pneg %p63
        $region38: #{tpu_custom_call.1} parent=31 // pred_check_branch
          %188 = sbr.rel (%p186) target = $region40
        $region39: #{tpu_custom_call.1} parent=31 // pred_region
          %189 = dma.done [#allocation6], 96
        $region40: #{tpu_custom_call.1} parent=31 // pred_fallthru
          _
        // Predicated region
        $region41: #{tpu_custom_call.1} parent=31 // pred_check
          %p190 = pneg %p84
        $region42: #{tpu_custom_call.1} parent=31 // pred_check_branch
          %192 = sbr.rel (%p190) target = $region44
        $region43: #{tpu_custom_call.1} parent=31 // pred_region
          %193 = dma.done [#allocation6], 96
        $region44: #{tpu_custom_call.1} parent=31 // pred_fallthru
          _
        %s194 = sand.u32 %s29, 1
        %s195 = scalar_lea.sflag [#allocation3], %s194
        %s196 = sand.u32 %s29, 1
        %s197 = smul.addr %s196, 48
        %s198 = scalar_lea.vmem [#allocation2], %s197
        %p199 = pneg %p42
        %p200 = pneg %p39
        %p201 = pneg %p63
        %p202 = pneg %p60
        %p203 = pneg %p84
        %p204 = pneg %p81
        %p205 = pneg %p110
        %p206 = pneg %p107
        %s207 = sand.u32 %s97, 1
        %s208 = scalar_lea.sflag [#allocation4], %s207
        %s209 = sand.u32 %s97, 1
        %s210 = smul.addr %s209, 24
        %s211 = scalar_lea.vmem [#allocation8], %s210
        %v212 = vld [vmem:[%s181] sm:$0xff]
        %v213 = vld [vmem:[%s181 + $0x8] sm:$0xff]
        %v214 = vld [vmem:[%s181 + $0x10] sm:$0xff]
        %v215 = vld [vmem:[%s181 + $0x18] sm:$0xff]
        %v216 = vld [vmem:[%s181 + $0x20] sm:$0xff]
        %v217 = vld [vmem:[%s181 + $0x28] sm:$0xff]
        %v218 = vld [vmem:[#allocation5] sm:$0x3f]
        %v219 = vld [vmem:[#allocation7] sm:$0x3f]
        %v220 = vadd.f32 %v212, %v213
        %v221 = vadd.f32 %v220, %v214
        %v222 = vadd.f32 %v221, %v215
        %v223 = vadd.f32 %v222, %v216
        %v224 = vadd.f32 %v223, %v217
        %225 = vadd.xlane.f32.xlu0 %v224
        %v226 = vpop.xlane.xlu0 %225
        %v227 = vrcp.pop 768.0
        %v228 = vmul.f32 %v226, %v227
        %v229 = vsub.f32 %v212, %v228
        %v230 = vsub.f32 %v213, %v228
        %v231 = vsub.f32 %v214, %v228
        %v232 = vsub.f32 %v215, %v228
        %v233 = vsub.f32 %v216, %v228
        %v234 = vsub.f32 %v217, %v228
        %v235 = vmul.f32 %v229, %v229
        %v236 = vmul.f32 %v230, %v230
        %v237 = vmul.f32 %v231, %v231
        %v238 = vmul.f32 %v232, %v232
        %v239 = vmul.f32 %v233, %v233
        %v240 = vmul.f32 %v234, %v234
        %v241 = vadd.f32 %v235, %v236
        %v242 = vadd.f32 %v241, %v237
        %v243 = vadd.f32 %v242, %v238
        %v244 = vadd.f32 %v243, %v239
        %v245 = vadd.f32 %v244, %v240
        %246 = vadd.xlane.f32.xlu0 %v245
        %v247 = vpop.xlane.xlu0 %246
        %v248 = vmul.f32 %v247, %v227
        %v249 = vadd.f32 %v248, 1e-12
        %v250 = vrsqrt.pop %v249
        %v251 = vmul.f32 %v229, %v250
        %v252 = vmul.f32 %v230, %v250
        %v253 = vmul.f32 %v231, %v250
        %v254 = vmul.f32 %v232, %v250
        %v255 = vmul.f32 %v233, %v250
        %v256 = vmul.f32 %v234, %v250
        %v258 = vlaneseq
        %v259 = vshrl.u32 %v258, 7
        %v260 = vsub.s32 0, %v259
        %v261 = vrot.slane %v218, %v260
        %v262 = vlaneseq
        %v263 = vshrl.u32 %v262, 7
        %v264 = vsub.s32 1, %v263
        %v265 = vrot.slane %v218, %v264
        %v266 = vlaneseq
        %v267 = vshrl.u32 %v266, 7
        %v268 = vsub.s32 2, %v267
        %v269 = vrot.slane %v218, %v268
        %v270 = vlaneseq
        %v271 = vshrl.u32 %v270, 7
        %v272 = vsub.s32 3, %v271
        %v273 = vrot.slane %v218, %v272
        %v274 = vlaneseq
        %v275 = vshrl.u32 %v274, 7
        %v276 = vsub.s32 4, %v275
        %v277 = vrot.slane %v218, %v276
        %v278 = vlaneseq
        %v279 = vshrl.u32 %v278, 7
        %v280 = vsub.s32 5, %v279
        %v281 = vrot.slane %v218, %v280
        %v288 = vmul.f32 %v251, %v261
        %v289 = vmul.f32 %v252, %v265
        %v290 = vmul.f32 %v253, %v269
        %v291 = vmul.f32 %v254, %v273
        %v292 = vmul.f32 %v255, %v277
        %v293 = vmul.f32 %v256, %v281
        %v295 = vlaneseq
        %v296 = vshrl.u32 %v295, 7
        %v297 = vsub.s32 0, %v296
        %v298 = vrot.slane %v219, %v297
        %v299 = vlaneseq
        %v300 = vshrl.u32 %v299, 7
        %v301 = vsub.s32 1, %v300
        %v302 = vrot.slane %v219, %v301
        %v303 = vlaneseq
        %v304 = vshrl.u32 %v303, 7
        %v305 = vsub.s32 2, %v304
        %v306 = vrot.slane %v219, %v305
        %v307 = vlaneseq
        %v308 = vshrl.u32 %v307, 7
        %v309 = vsub.s32 3, %v308
        %v310 = vrot.slane %v219, %v309
        %v311 = vlaneseq
        %v312 = vshrl.u32 %v311, 7
        %v313 = vsub.s32 4, %v312
        %v314 = vrot.slane %v219, %v313
        %v315 = vlaneseq
        %v316 = vshrl.u32 %v315, 7
        %v317 = vsub.s32 5, %v316
        %v318 = vrot.slane %v219, %v317
        %v325 = vadd.f32 %v288, %v298
        %v326 = vadd.f32 %v289, %v302
        %v327 = vadd.f32 %v290, %v306
        %v328 = vadd.f32 %v291, %v310
        %v329 = vadd.f32 %v292, %v314
        %v330 = vadd.f32 %v293, %v318
        %v331 = vpack.c.bf16 %v325, %v325
        %v332 = vpack.c.bf16 %v326, %v326
        %v333 = vpack.c.bf16 %v327, %v327
        %v334 = vpack.c.bf16 %v328, %v328
        %v335 = vpack.c.bf16 %v329, %v329
        %v336 = vpack.c.bf16 %v330, %v330
        %v343 = vunpack.c.l.b16 %v331
        %v344 = vunpack.c.l.b16 %v332
        %v345 = vunpack.c.l.b16 %v333
        %v346 = vunpack.c.l.b16 %v334
        %v347 = vunpack.c.l.b16 %v335
        %v348 = vunpack.c.l.b16 %v336
        %v349 = vpack.c.b16 %v344, %v343
        %v350 = vpack.c.b16 %v346, %v345
        %v351 = vpack.c.b16 %v348, %v347
        %355 = vst [vmem:[%s211] sm:$0xff] %v349
        %356 = vst [vmem:[%s211 + $0x8] sm:$0xff] %v350
        %357 = vst [vmem:[%s211 + $0x10] sm:$0xff] %v351
        %s358 = sand.u32 %s97, 1
        %s359 = scalar_lea.sflag [#allocation4], %s358
        %s360 = sand.u32 %s97, 1
        %s361 = smul.addr %s360, 24
        %s362 = scalar_lea.vmem [#allocation8], %s361
        // Predicated region
        $region45: #{tpu_custom_call.1} parent=31 // pred_check
          %p363 = pneg %p107
        $region46: #{tpu_custom_call.1} parent=31 // pred_check_branch
          %365 = sbr.rel (%p363) target = $region48
        $region47: #{tpu_custom_call.1} parent=31 // pred_region
          %s367 = ssub.s32 384, 384
          %368 = vsyncadd %s359, %s367
          %s369 = smul.addr %s21, 6
          %s370 = smul.addr %s369, 64
          %s371 = scalar_lea.hbm %s3, %s370
          %s373 = sshll.u32 %s362, 4
          %s374 = int_to_ptr.vmem [resolvable:$true] %s373
          %376 = dma.vmem_to_hbm [thread:$0]  %s374, 384, %s371, %s359
        $region48: #{tpu_custom_call.1} parent=31 // pred_fallthru
          _
      $region32: #{tpu_custom_call.1} parent=5 // pred_fallthru
        _
      %p377 = scmp.le.s32.totalorder 2, %s16
      // Predicated region
      $region49: #{tpu_custom_call.1} parent=5 // pred_check
        %p378 = pneg %p377
      $region50: #{tpu_custom_call.1} parent=5 // pred_check_branch
        %380 = sbr.rel (%p378) target = $region52
      $region51: #{tpu_custom_call.1} parent=5 // pred_region
        %s381 = ssub.s32 %s16, 2
        // Predicated region
        $region53: #{tpu_custom_call.1} parent=51 // pred_check
          %p382 = pneg %p113
        $region54: #{tpu_custom_call.1} parent=51 // pred_check_branch
          %384 = sbr.rel (%p382) target = $region56
        $region55: #{tpu_custom_call.1} parent=51 // pred_region
          %s385 = sand.u32 %s98, 1
          %s386 = scalar_lea.sflag [#allocation4], %s385
          %s387 = sand.u32 %s98, 1
          %s388 = smul.addr %s387, 24
          %s389 = scalar_lea.vmem [#allocation8], %s388
          %390 = dma.done %s386, 384
        $region56: #{tpu_custom_call.1} parent=51 // pred_fallthru
          _
      $region52: #{tpu_custom_call.1} parent=5 // pred_fallthru
        _
    $region6: #{tpu_custom_call.1} parent=1 // loop_footer
      %s20 = sadd.s32 1, %s16
    $region7: #{tpu_custom_call.1} parent=1 // loop_footer_branch
      %15 = sbr.rel target = $region3
    $region8: #{tpu_custom_call.1} parent=1 // loop_exit
      _
    %391 = vsyncpa [#allocation3], 1
    %s392 = scalar_lea.sflag [#allocation3], 1
    %393 = vsyncpa %s392, 1
    %394 = vsyncpa [#allocation6], 1
    %395 = vsyncpa [#allocation4], 1
    %s396 = scalar_lea.sflag [#allocation4], 1
    %397 = vsyncpa %s396, 1

</llo_original>
